<compile_context>
chip_gen: v5e
topology: v5e:2x2
jax: 0.10.0
libtpu: 0.0.40
codegen_flags: <defaults>
</compile_context>

<pallas_src>
import functools

import numpy as np
import jax
import jax.numpy as jnp
from jax.experimental import pallas as pl
from jax.experimental.pallas import tpu as pltpu

BN_EPS = 1e-5
NORM_EPS = 1e-12


def projection_head_kernel(x_ref, w1_ref, w2_ref, params_ref, o_ref, *, hp, op):
    """Fused forward pass. hp / op are the (lane-padded) hidden / output widths."""
    x = x_ref[...]                                   # (B, Kp)
    w1 = w1_ref[...]                                 # (Kp, hp)
    w2 = w2_ref[...]                                 # (hp, op)

    p = params_ref[...]                              # (4, max(hp, op))
    b1 = p[0:1, :hp]
    gamma = p[1:2, :hp]
    beta = p[2:3, :hp]
    b2 = p[3:4, :op]

    # Linear 1 (MXU)
    h = jnp.dot(x, w1, preferred_element_type=jnp.float32,
                precision=jax.lax.Precision.HIGHEST) + b1

    # BatchNorm1d, training mode (batch stats, biased variance), fused:
    # single pass over h for the moments, single FMA pass to apply.
    inv_n = 1.0 / x.shape[0]
    mean = jnp.sum(h, axis=0, keepdims=True) * inv_n           # (1, hp)
    meansq = jnp.sum(h * h, axis=0, keepdims=True) * inv_n     # (1, hp)
    var = jnp.maximum(meansq - mean * mean, 0.0)
    inv = jax.lax.rsqrt(var + BN_EPS)                          # EUP slot
    scale = gamma * inv
    shift = beta - mean * scale
    h = h * scale + shift                                      # one FMA per element

    # ReLU
    h = jnp.maximum(h, 0.0)

    # Linear 2 (MXU)
    z = jnp.dot(h, w2, preferred_element_type=jnp.float32,
                precision=jax.lax.Precision.HIGHEST) + b2

    # F.normalize(dim=1): z / max(||z||_2, 1e-12)  ==  z * rsqrt(max(sumsq, 1e-24))
    sumsq = jnp.sum(z * z, axis=1, keepdims=True)
    o_ref[...] = z * jax.lax.rsqrt(jnp.maximum(sumsq, NORM_EPS * NORM_EPS))


def _round_up(n, m):
    return ((n + m - 1) // m) * m


def projection_head(x, w1, b1, gamma, beta, w2, b2):
    B, in_dim = x.shape
    hidden = w1.shape[1]
    out_dim = w2.shape[1]

    # Pad feature dims to the 128-lane width so every VPU op and the output store are
    # lane-dense. Zero padding is exact: zero w1 columns + zero b1/beta keep padded hidden
    # features at 0 through BN/ReLU, zero w2 rows/columns keep padded output columns at 0,
    # and zero columns contribute nothing to the L2 norm.
    kp = _round_up(in_dim, 128)
    hp = _round_up(hidden, 128)
    op = _round_up(out_dim, 128)

    xp = x if kp == in_dim else jnp.pad(x, ((0, 0), (0, kp - in_dim)))
    w1p = (w1 if (kp == in_dim and hp == hidden)
           else jnp.pad(w1, ((0, kp - in_dim), (0, hp - hidden))))
    w2p = (w2 if (hp == hidden and op == out_dim)
           else jnp.pad(w2, ((0, hp - hidden), (0, op - out_dim))))

    # Pack all small per-feature parameters into one VMEM block (4 inputs total).
    pwidth = max(hp, op)
    params = jnp.zeros((4, pwidth), jnp.float32)
    params = params.at[0, :hidden].set(b1)
    params = params.at[1, :hidden].set(gamma)
    params = params.at[2, :hidden].set(beta)
    params = params.at[3, :out_dim].set(b2)

    kernel = functools.partial(projection_head_kernel, hp=hp, op=op)
    out_p = pl.pallas_call(
        kernel,
        out_shape=jax.ShapeDtypeStruct((B, op), jnp.float32),
        in_specs=[pl.BlockSpec(memory_space=pltpu.MemorySpace.VMEM)] * 4,
        out_specs=pl.BlockSpec(memory_space=pltpu.MemorySpace.VMEM),
    )(xp, w1p, w2p, params)

    return out_p if op == out_dim else out_p[:, :out_dim]


def reference(x, w1, b1, gamma, beta, w2, b2):
    """Pure-JAX reference with PyTorch semantics (training-mode BN, F.normalize)."""
    h = jnp.dot(x, w1, precision=jax.lax.Precision.HIGHEST) + b1
    mean = h.mean(axis=0, keepdims=True)
    var = ((h - mean) ** 2).mean(axis=0, keepdims=True)
    h = (h - mean) / jnp.sqrt(var + BN_EPS) * gamma + beta
    h = jnp.maximum(h, 0.0)
    z = jnp.dot(h, w2, precision=jax.lax.Precision.HIGHEST) + b2
    n = jnp.sqrt(jnp.sum(z * z, axis=1, keepdims=True))
    return z / jnp.maximum(n, NORM_EPS)


if __name__ == "__main__":
    # Small, lane-aligned shapes consistent with the module (defaults scaled down):
    # ProjectionHead(in_dim=256, hidden_dim=128, out_dim=128), batch of 8.
    B, in_dim, hidden_dim, out_dim = 8, 256, 128, 128

    key = jax.random.PRNGKey(0)
    kx, kw1, kb1, kw2, kb2 = jax.random.split(key, 5)

    x = jax.random.normal(kx, (B, in_dim), dtype=jnp.float32)

    # Deterministic parameter init (PyTorch-Linear-style uniform bounds, synthetic values).
    lim1 = 1.0 / np.sqrt(in_dim)
    w1 = jax.random.uniform(kw1, (in_dim, hidden_dim), jnp.float32, -lim1, lim1)
    b1 = jax.random.uniform(kb1, (hidden_dim,), jnp.float32, -lim1, lim1)
    gamma = jnp.ones((hidden_dim,), jnp.float32)   # BatchNorm1d default weight
    beta = jnp.zeros((hidden_dim,), jnp.float32)   # BatchNorm1d default bias
    lim2 = 1.0 / np.sqrt(hidden_dim)
    w2 = jax.random.uniform(kw2, (hidden_dim, out_dim), jnp.float32, -lim2, lim2)
    b2 = jax.random.uniform(kb2, (out_dim,), jnp.float32, -lim2, lim2)

    out = projection_head(x, w1, b1, gamma, beta, w2, b2)
    out = jax.block_until_ready(out)

    ref = reference(x, w1, b1.reshape(1, -1), gamma.reshape(1, -1),
                    beta.reshape(1, -1), w2, b2.reshape(1, -1))
    np.testing.assert_allclose(np.asarray(out), np.asarray(ref), rtol=1e-5, atol=2e-5)

    print("KERNEL_OK")
</pallas_src>

<mosaic_0001>
module attributes {stable_mosaic.version = 11 : i64} {
  func.func @projection_head_kernel(%arg0: memref<8x256xf32, #tpu.memory_space<vmem>>, %arg1: memref<256x128xf32, #tpu.memory_space<vmem>>, %arg2: memref<128x128xf32, #tpu.memory_space<vmem>>, %arg3: memref<4x128xf32, #tpu.memory_space<vmem>>, %arg4: memref<8x128xf32, #tpu.memory_space<vmem>>) attributes {dimension_semantics = [], scalar_prefetch = 0 : i64, scratch_operands = 0 : i64, tpu.core_type = #tpu.core_type<tc>} {
    %c0 = arith.constant 0 : index
    %c0_0 = arith.constant 0 : index
    %0 = vector.load %arg0[%c0, %c0_0] : memref<8x256xf32, #tpu.memory_space<vmem>>, vector<8x256xf32>
    %c0_1 = arith.constant 0 : index
    %c0_2 = arith.constant 0 : index
    %1 = vector.load %arg1[%c0_1, %c0_2] : memref<256x128xf32, #tpu.memory_space<vmem>>, vector<256x128xf32>
    %c0_3 = arith.constant 0 : index
    %c0_4 = arith.constant 0 : index
    %2 = vector.load %arg2[%c0_3, %c0_4] : memref<128x128xf32, #tpu.memory_space<vmem>>, vector<128x128xf32>
    %c0_5 = arith.constant 0 : index
    %c0_6 = arith.constant 0 : index
    %3 = vector.load %arg3[%c0_5, %c0_6] : memref<4x128xf32, #tpu.memory_space<vmem>>, vector<4x128xf32>
    %4 = vector.extract_strided_slice %3 {offsets = [0, 0], sizes = [1, 128], strides = [1, 1]} : vector<4x128xf32> to vector<1x128xf32>
    %5 = vector.extract_strided_slice %3 {offsets = [1, 0], sizes = [1, 128], strides = [1, 1]} : vector<4x128xf32> to vector<1x128xf32>
    %6 = vector.extract_strided_slice %3 {offsets = [2, 0], sizes = [1, 128], strides = [1, 1]} : vector<4x128xf32> to vector<1x128xf32>
    %7 = vector.extract_strided_slice %3 {offsets = [3, 0], sizes = [1, 128], strides = [1, 1]} : vector<4x128xf32> to vector<1x128xf32>
    %cst = arith.constant dense<0.000000e+00> : vector<8x128xf32>
    %8 = tpu.matmul %0, %1, %cst {dimension_numbers = #tpu.dot_dimension_numbers<[1], [0], [0], [1], [0, 0, 1, 1], [], []>, precision = #tpu.contract_precision<fp32>} : vector<8x256xf32>, vector<256x128xf32>, vector<8x128xf32> -> vector<8x128xf32>
    %9 = vector.broadcast %4 : vector<1x128xf32> to vector<8x128xf32>
    %10 = arith.addf %8, %9 : vector<8x128xf32>
    %cst_7 = arith.constant dense<0.000000e+00> : vector<128xf32>
    %11 = vector.multi_reduction <add>, %10, %cst_7 [0] : vector<8x128xf32> to vector<128xf32>
    %12 = vector.shape_cast %11 : vector<128xf32> to vector<1x128xf32>
    %cst_8 = arith.constant 1.250000e-01 : f32
    %13 = vector.broadcast %cst_8 : f32 to vector<1x128xf32>
    %14 = arith.mulf %12, %13 : vector<1x128xf32>
    %15 = arith.mulf %10, %10 : vector<8x128xf32>
    %cst_9 = arith.constant dense<0.000000e+00> : vector<128xf32>
    %16 = vector.multi_reduction <add>, %15, %cst_9 [0] : vector<8x128xf32> to vector<128xf32>
    %17 = vector.shape_cast %16 : vector<128xf32> to vector<1x128xf32>
    %cst_10 = arith.constant 1.250000e-01 : f32
    %18 = vector.broadcast %cst_10 : f32 to vector<1x128xf32>
    %19 = arith.mulf %17, %18 : vector<1x128xf32>
    %20 = arith.mulf %14, %14 : vector<1x128xf32>
    %21 = arith.subf %19, %20 : vector<1x128xf32>
    %cst_11 = arith.constant 0.000000e+00 : f32
    %22 = vector.broadcast %cst_11 : f32 to vector<1x128xf32>
    %23 = arith.maximumf %21, %22 : vector<1x128xf32>
    %cst_12 = arith.constant 9.99999974E-6 : f32
    %24 = vector.broadcast %cst_12 : f32 to vector<1x128xf32>
    %25 = arith.addf %23, %24 : vector<1x128xf32>
    %26 = math.rsqrt %25 : vector<1x128xf32>
    %27 = arith.mulf %5, %26 : vector<1x128xf32>
    %28 = arith.mulf %14, %27 : vector<1x128xf32>
    %29 = arith.subf %6, %28 : vector<1x128xf32>
    %30 = vector.broadcast %27 : vector<1x128xf32> to vector<8x128xf32>
    %31 = arith.mulf %10, %30 : vector<8x128xf32>
    %32 = vector.broadcast %29 : vector<1x128xf32> to vector<8x128xf32>
    %33 = arith.addf %31, %32 : vector<8x128xf32>
    %cst_13 = arith.constant 0.000000e+00 : f32
    %34 = vector.broadcast %cst_13 : f32 to vector<8x128xf32>
    %35 = arith.maximumf %33, %34 : vector<8x128xf32>
    %cst_14 = arith.constant dense<0.000000e+00> : vector<8x128xf32>
    %36 = tpu.matmul %35, %2, %cst_14 {dimension_numbers = #tpu.dot_dimension_numbers<[1], [0], [0], [1], [0, 0, 1, 1], [], []>, precision = #tpu.contract_precision<fp32>} : vector<8x128xf32>, vector<128x128xf32>, vector<8x128xf32> -> vector<8x128xf32>
    %37 = vector.broadcast %7 : vector<1x128xf32> to vector<8x128xf32>
    %38 = arith.addf %36, %37 : vector<8x128xf32>
    %39 = arith.mulf %38, %38 : vector<8x128xf32>
    %cst_15 = arith.constant dense<0.000000e+00> : vector<8xf32>
    %40 = vector.multi_reduction <add>, %39, %cst_15 [1] : vector<8x128xf32> to vector<8xf32>
    %41 = vector.shape_cast %40 : vector<8xf32> to vector<8x1xf32>
    %cst_16 = arith.constant 1.000000e-24 : f32
    %42 = vector.broadcast %cst_16 : f32 to vector<8x1xf32>
    %43 = arith.maximumf %41, %42 : vector<8x1xf32>
    %44 = math.rsqrt %43 : vector<8x1xf32>
    %45 = vector.broadcast %44 : vector<8x1xf32> to vector<8x128xf32>
    %46 = arith.mulf %38, %45 : vector<8x128xf32>
    %c0_17 = arith.constant 0 : index
    %c0_18 = arith.constant 0 : index
    %47 = vector.load %arg4[%c0_17, %c0_18] : memref<8x128xf32, #tpu.memory_space<vmem>>, vector<8x128xf32>
    tpu.vector_store %arg4[%c0_17, %c0_18], %46 {strides = array<i32>} : memref<8x128xf32, #tpu.memory_space<vmem>>, vector<8x128xf32>,
    return
  }
}

</mosaic_0001>

<llo_original>
// kernel: tpu_custom_call.1
$region0: #{tpu_custom_call.1}
  #allocation0 [shape = 'u32[]', space=smem, size = 0x4, offset = 0x4, fixed_abs, tag = 'smem constant byte address 0x4 - core index']
  #allocation1 [shape = 'u32[72,128]{1,0:T(1,128)}', space=vmem, size = 0x9000, scoped, tag = 'internal scratch']
  %s0 = inlined_call_operand.hbm [shape: f32[8,256], index: 0, kind: input, shape index: {}]
  %s1 = inlined_call_operand.hbm [shape: f32[256,128], index: 1, kind: input, shape index: {}]
  %s2 = inlined_call_operand.hbm [shape: f32[128,128], index: 2, kind: input, shape index: {}]
  %s3 = inlined_call_operand.hbm [shape: f32[4,128], index: 3, kind: input, shape index: {}]
  %s4 = inlined_call_operand.hbm [shape: f32[8,128], index: 4, kind: output, shape index: {}]
  %s5 = sld [smem:[#allocation0]]
  $region42: #{tpu_custom_call.1} parent=0
    _
  %s7 = ssub.s32 1, %s5
  %s8 = scalar_select 0, %s7, %s5
  $region1: #{tpu_custom_call.1} parent=0
    #allocation2 [shape = 'u8[8192]{0}', space=vmem, size = 0x2000, scoped, tag = 'input window, operand 0, single buffered']
    #allocation3 [shape = 's32[1]{0}', space=sflag, size = 0x4, scoped, tag = 'scoped memory for tpu_custom_call.1']
    #allocation4 [shape = 's32[1]{0}', space=sflag, size = 0x4, scoped, tag = 'scoped memory for tpu_custom_call.1']
    #allocation5 [shape = 'u8[131072]{0}', space=vmem, size = 0x20000, scoped, tag = 'input window, operand 1, single buffered']
    #allocation6 [shape = 's32[1]{0}', space=sflag, size = 0x4, scoped, tag = 'scoped memory for tpu_custom_call.1']
    #allocation7 [shape = 'u8[65536]{0}', space=vmem, size = 0x10000, scoped, tag = 'input window, operand 2, single buffered']
    #allocation8 [shape = 'u8[2048]{0}', space=vmem, size = 0x800, scoped, tag = 'input window, operand 3, single buffered']
    #allocation9 [shape = 's32[1]{0}', space=sflag, size = 0x4, scoped, tag = 'scoped memory for tpu_custom_call.1']
    #allocation10 [shape = 'u8[4096]{0}', space=vmem, size = 0x1000, scoped, tag = 'output window, operand 0, single buffered']
    %9 = vsyncpa [#allocation3], 0
    %10 = vsyncpa [#allocation6], 0
    %11 = vsyncpa [#allocation9], 0
    %12 = vsyncpa [#allocation4], 0
    // Predicated region
    $region2: #{tpu_custom_call.1} parent=1 // pred_check
      _
    $region3: #{tpu_custom_call.1} parent=1 // pred_check_branch
      %14 = sbr.rel (0) target = $region5
    $region4: #{tpu_custom_call.1} parent=1 // pred_region
      %16 = vsyncadd [#allocation3], 0
      %s18 = sshll.u32 %s0, 4
      %s19 = int_to_ptr.hbm [resolvable:$true] %s18
      %s20 = sshll.u32 [#allocation2], 4
      %s21 = int_to_ptr.vmem [resolvable:$true] %s20
      %23 = dma.hbm_to_vmem [thread:$0]  %s19, 256, %s21, [#allocation3]
    $region5: #{tpu_custom_call.1} parent=1 // pred_fallthru
      _
    // Predicated region
    $region6: #{tpu_custom_call.1} parent=1 // pred_check
      _
    $region7: #{tpu_custom_call.1} parent=1 // pred_check_branch
      %25 = sbr.rel (0) target = $region9
    $region8: #{tpu_custom_call.1} parent=1 // pred_region
      %27 = vsyncadd [#allocation6], 0
      %s28 = sshll.u32 %s1, 4
      %s29 = int_to_ptr.hbm [resolvable:$true] %s28
      %s30 = sshll.u32 [#allocation5], 4
      %s31 = int_to_ptr.vmem [resolvable:$true] %s30
      %36 = dma.hbm_to_vmem [thread:$0]  %s29, 4096, %s31, [#allocation6], 128, 128, 8
    $region9: #{tpu_custom_call.1} parent=1 // pred_fallthru
      _
    // Predicated region
    $region10: #{tpu_custom_call.1} parent=1 // pred_check
      _
    $region11: #{tpu_custom_call.1} parent=1 // pred_check_branch
      %38 = sbr.rel (0) target = $region13
    $region12: #{tpu_custom_call.1} parent=1 // pred_region
      %40 = vsyncadd [#allocation6], 0
      %s41 = sshll.u32 %s2, 4
      %s42 = int_to_ptr.hbm [resolvable:$true] %s41
      %s43 = sshll.u32 [#allocation7], 4
      %s44 = int_to_ptr.vmem [resolvable:$true] %s43
      %49 = dma.hbm_to_vmem [thread:$0]  %s42, 2048, %s44, [#allocation6], 128, 128, 8
    $region13: #{tpu_custom_call.1} parent=1 // pred_fallthru
      _
    // Predicated region
    $region14: #{tpu_custom_call.1} parent=1 // pred_check
      _
    $region15: #{tpu_custom_call.1} parent=1 // pred_check_branch
      %51 = sbr.rel (0) target = $region17
    $region16: #{tpu_custom_call.1} parent=1 // pred_region
      %53 = vsyncadd [#allocation9], 0
      %s55 = sshll.u32 %s3, 4
      %s56 = int_to_ptr.hbm [resolvable:$true] %s55
      %s57 = sshll.u32 [#allocation8], 4
      %s58 = int_to_ptr.vmem [resolvable:$true] %s57
      %60 = dma.hbm_to_vmem [thread:$0]  %s56, 64, %s58, [#allocation9]
    $region17: #{tpu_custom_call.1} parent=1 // pred_fallthru
      _
    // Predicated region
    $region18: #{tpu_custom_call.1} parent=1 // pred_check
      _
    $region19: #{tpu_custom_call.1} parent=1 // pred_check_branch
      %62 = sbr.rel (0) target = $region21
    $region20: #{tpu_custom_call.1} parent=1 // pred_region
      %64 = dma.done [#allocation3], 256
    $region21: #{tpu_custom_call.1} parent=1 // pred_fallthru
      _
    // Predicated region
    $region22: #{tpu_custom_call.1} parent=1 // pred_check
      _
    $region23: #{tpu_custom_call.1} parent=1 // pred_check_branch
      %66 = sbr.rel (0) target = $region25
    $region24: #{tpu_custom_call.1} parent=1 // pred_region
      %68 = dma.done [#allocation6], 4096
    $region25: #{tpu_custom_call.1} parent=1 // pred_fallthru
      _
    // Predicated region
    $region26: #{tpu_custom_call.1} parent=1 // pred_check
      _
    $region27: #{tpu_custom_call.1} parent=1 // pred_check_branch
      %70 = sbr.rel (0) target = $region29
    $region28: #{tpu_custom_call.1} parent=1 // pred_region
      %72 = dma.done [#allocation6], 2048
    $region29: #{tpu_custom_call.1} parent=1 // pred_fallthru
      _
    // Predicated region
    $region30: #{tpu_custom_call.1} parent=1 // pred_check
      _
    $region31: #{tpu_custom_call.1} parent=1 // pred_check_branch
      %74 = sbr.rel (0) target = $region33
    $region32: #{tpu_custom_call.1} parent=1 // pred_region
      %76 = dma.done [#allocation9], 64
    $region33: #{tpu_custom_call.1} parent=1 // pred_fallthru
      _
    %v77 = vld [vmem:[#allocation2] sm:$0xff]
    %v78 = vld [vmem:[#allocation2 + $0x8] sm:$0xff]
    %v79 = vld [vmem:[#allocation5] sm:$0xff]
    %v80 = vld [vmem:[#allocation5 + $0x8] sm:$0xff]
    %v81 = vld [vmem:[#allocation5 + $0x10] sm:$0xff]
    %v82 = vld [vmem:[#allocation5 + $0x18] sm:$0xff]
    %v83 = vld [vmem:[#allocation5 + $0x20] sm:$0xff]
    %v84 = vld [vmem:[#allocation5 + $0x28] sm:$0xff]
    %v85 = vld [vmem:[#allocation5 + $0x30] sm:$0xff]
    %v86 = vld [vmem:[#allocation5 + $0x38] sm:$0xff]
    %v87 = vld [vmem:[#allocation5 + $0x40] sm:$0xff]
    %v88 = vld [vmem:[#allocation5 + $0x48] sm:$0xff]
    %v89 = vld [vmem:[#allocation5 + $0x50] sm:$0xff]
    %v90 = vld [vmem:[#allocation5 + $0x58] sm:$0xff]
    %v91 = vld [vmem:[#allocation5 + $0x60] sm:$0xff]
    %v92 = vld [vmem:[#allocation5 + $0x68] sm:$0xff]
    %v93 = vld [vmem:[#allocation5 + $0x70] sm:$0xff]
    %v94 = vld [vmem:[#allocation5 + $0x78] sm:$0xff]
    %v95 = vld [vmem:[#allocation5 + $0x80] sm:$0xff]
    %v96 = vld [vmem:[#allocation5 + $0x88] sm:$0xff]
    %v97 = vld [vmem:[#allocation5 + $0x90] sm:$0xff]
    %v98 = vld [vmem:[#allocation5 + $0x98] sm:$0xff]
    %v99 = vld [vmem:[#allocation5 + $0xa0] sm:$0xff]
    %v100 = vld [vmem:[#allocation5 + $0xa8] sm:$0xff]
    %v101 = vld [vmem:[#allocation5 + $0xb0] sm:$0xff]
    %v102 = vld [vmem:[#allocation5 + $0xb8] sm:$0xff]
    %v103 = vld [vmem:[#allocation5 + $0xc0] sm:$0xff]
    %v104 = vld [vmem:[#allocation5 + $0xc8] sm:$0xff]
    %v105 = vld [vmem:[#allocation5 + $0xd0] sm:$0xff]
    %v106 = vld [vmem:[#allocation5 + $0xd8] sm:$0xff]
    %v107 = vld [vmem:[#allocation5 + $0xe0] sm:$0xff]
    %v108 = vld [vmem:[#allocation5 + $0xe8] sm:$0xff]
    %v109 = vld [vmem:[#allocation5 + $0xf0] sm:$0xff]
    %v110 = vld [vmem:[#allocation5 + $0xf8] sm:$0xff]
    %v111 = vld [vmem:[#allocation7] sm:$0xff]
    %v112 = vld [vmem:[#allocation7 + $0x8] sm:$0xff]
    %v113 = vld [vmem:[#allocation7 + $0x10] sm:$0xff]
    %v114 = vld [vmem:[#allocation7 + $0x18] sm:$0xff]
    %v115 = vld [vmem:[#allocation7 + $0x20] sm:$0xff]
    %v116 = vld [vmem:[#allocation7 + $0x28] sm:$0xff]
    %v117 = vld [vmem:[#allocation7 + $0x30] sm:$0xff]
    %v118 = vld [vmem:[#allocation7 + $0x38] sm:$0xff]
    %v119 = vld [vmem:[#allocation7 + $0x40] sm:$0xff]
    %v120 = vld [vmem:[#allocation7 + $0x48] sm:$0xff]
    %v121 = vld [vmem:[#allocation7 + $0x50] sm:$0xff]
    %v122 = vld [vmem:[#allocation7 + $0x58] sm:$0xff]
    %v123 = vld [vmem:[#allocation7 + $0x60] sm:$0xff]
    %v124 = vld [vmem:[#allocation7 + $0x68] sm:$0xff]
    %v125 = vld [vmem:[#allocation7 + $0x70] sm:$0xff]
    %v126 = vld [vmem:[#allocation7 + $0x78] sm:$0xff]
    %v127 = vld [vmem:[#allocation8] sm:$0xf]
    %v128 = vperm.slane %v127, 0
    %v129 = vand.u32 %v94, 4294901760
    %130 = vmatpush.msra.mxu0 %v129
    %v131 = vand.u32 %v93, 4294901760
    %132 = vmatpush.msra.mxu0 %v131
    %v133 = vand.u32 %v92, 4294901760
    %134 = vmatpush.msra.mxu0 %v133
    %v135 = vand.u32 %v91, 4294901760
    %136 = vmatpush.msra.mxu0 %v135
    %v137 = vand.u32 %v90, 4294901760
    %138 = vmatpush.msra.mxu0 %v137
    %v139 = vand.u32 %v89, 4294901760
    %140 = vmatpush.msra.mxu0 %v139
    %v141 = vand.u32 %v88, 4294901760
    %142 = vmatpush.msra.mxu0 %v141
    %v143 = vand.u32 %v87, 4294901760
    %144 = vmatpush.msra.mxu0 %v143
    %v145 = vand.u32 %v86, 4294901760
    %146 = vmatpush.msra.mxu0 %v145
    %v147 = vand.u32 %v85, 4294901760
    %148 = vmatpush.msra.mxu0 %v147
    %v149 = vand.u32 %v84, 4294901760
    %150 = vmatpush.msra.mxu0 %v149
    %v151 = vand.u32 %v83, 4294901760
    %152 = vmatpush.msra.mxu0 %v151
    %v153 = vand.u32 %v82, 4294901760
    %154 = vmatpush.msra.mxu0 %v153
    %v155 = vand.u32 %v81, 4294901760
    %156 = vmatpush.msra.mxu0 %v155
    %v157 = vand.u32 %v80, 4294901760
    %158 = vmatpush.msra.mxu0 %v157
    %v159 = vand.u32 %v79, 4294901760
    %160 = vmatpush.msra.mxu0 %v159
    %v161 = vand.u32 %v77, 4294901760
    %v162 = vsub.f32 %v77, %v161
    %v163 = vand.u32 %v162, 4294901760
    %v164 = vsub.f32 %v162, %v163
    %v165 = vand.u32 %v164, 4294901760
    %166 = vmatmul.f32.gmra.mxu0 %v165
    %v167 = vpop.f32.mrf.mxu0
    %v168 = vadd.f32 %v128, %v167
    %169 = vdwg.mxu0
    %v170 = vand.u32 %v94, 4294901760
    %v171 = vsub.f32 %v94, %v170
    %v172 = vand.u32 %v171, 4294901760
    %v173 = vsub.f32 %v171, %v172
    %v174 = vand.u32 %v173, 4294901760
    %175 = vmatpush.msra.mxu0 %v174
    %v176 = vand.u32 %v93, 4294901760
    %v177 = vsub.f32 %v93, %v176
    %v178 = vand.u32 %v177, 4294901760
    %v179 = vsub.f32 %v177, %v178
    %v180 = vand.u32 %v179, 4294901760
    %181 = vmatpush.msra.mxu0 %v180
    %v182 = vand.u32 %v92, 4294901760
    %v183 = vsub.f32 %v92, %v182
    %v184 = vand.u32 %v183, 4294901760
    %v185 = vsub.f32 %v183, %v184
    %v186 = vand.u32 %v185, 4294901760
    %187 = vmatpush.msra.mxu0 %v186
    %v188 = vand.u32 %v91, 4294901760
    %v189 = vsub.f32 %v91, %v188
    %v190 = vand.u32 %v189, 4294901760
    %v191 = vsub.f32 %v189, %v190
    %v192 = vand.u32 %v191, 4294901760
    %193 = vmatpush.msra.mxu0 %v192
    %v194 = vand.u32 %v90, 4294901760
    %v195 = vsub.f32 %v90, %v194
    %v196 = vand.u32 %v195, 4294901760
    %v197 = vsub.f32 %v195, %v196
    %v198 = vand.u32 %v197, 4294901760
    %199 = vmatpush.msra.mxu0 %v198
    %v200 = vand.u32 %v89, 4294901760
    %v201 = vsub.f32 %v89, %v200
    %v202 = vand.u32 %v201, 4294901760
    %v203 = vsub.f32 %v201, %v202
    %v204 = vand.u32 %v203, 4294901760
    %205 = vmatpush.msra.mxu0 %v204
    %v206 = vand.u32 %v88, 4294901760
    %v207 = vsub.f32 %v88, %v206
    %v208 = vand.u32 %v207, 4294901760
    %v209 = vsub.f32 %v207, %v208
    %v210 = vand.u32 %v209, 4294901760
    %211 = vmatpush.msra.mxu0 %v210
    %v212 = vand.u32 %v87, 4294901760
    %v213 = vsub.f32 %v87, %v212
    %v214 = vand.u32 %v213, 4294901760
    %v215 = vsub.f32 %v213, %v214
    %v216 = vand.u32 %v215, 4294901760
    %217 = vmatpush.msra.mxu0 %v216
    %v218 = vand.u32 %v86, 4294901760
    %v219 = vsub.f32 %v86, %v218
    %v220 = vand.u32 %v219, 4294901760
    %v221 = vsub.f32 %v219, %v220
    %v222 = vand.u32 %v221, 4294901760
    %223 = vmatpush.msra.mxu0 %v222
    %v224 = vand.u32 %v85, 4294901760
    %v225 = vsub.f32 %v85, %v224
    %v226 = vand.u32 %v225, 4294901760
    %v227 = vsub.f32 %v225, %v226
    %v228 = vand.u32 %v227, 4294901760
    %229 = vmatpush.msra.mxu0 %v228
    %v230 = vand.u32 %v84, 4294901760
    %v231 = vsub.f32 %v84, %v230
    %v232 = vand.u32 %v231, 4294901760
    %v233 = vsub.f32 %v231, %v232
    %v234 = vand.u32 %v233, 4294901760
    %235 = vmatpush.msra.mxu0 %v234
    %v236 = vand.u32 %v83, 4294901760
    %v237 = vsub.f32 %v83, %v236
    %v238 = vand.u32 %v237, 4294901760
    %v239 = vsub.f32 %v237, %v238
    %v240 = vand.u32 %v239, 4294901760
    %241 = vmatpush.msra.mxu0 %v240
    %v242 = vand.u32 %v82, 4294901760
    %v243 = vsub.f32 %v82, %v242
    %v244 = vand.u32 %v243, 4294901760
    %v245 = vsub.f32 %v243, %v244
    %v246 = vand.u32 %v245, 4294901760
    %247 = vmatpush.msra.mxu0 %v246
    %v248 = vand.u32 %v81, 4294901760
    %v249 = vsub.f32 %v81, %v248
    %v250 = vand.u32 %v249, 4294901760
    %v251 = vsub.f32 %v249, %v250
    %v252 = vand.u32 %v251, 4294901760
    %253 = vmatpush.msra.mxu0 %v252
    %v254 = vand.u32 %v80, 4294901760
    %v255 = vsub.f32 %v80, %v254
    %v256 = vand.u32 %v255, 4294901760
    %v257 = vsub.f32 %v255, %v256
    %v258 = vand.u32 %v257, 4294901760
    %259 = vmatpush.msra.mxu0 %v258
    %v260 = vand.u32 %v79, 4294901760
    %v261 = vsub.f32 %v79, %v260
    %v262 = vand.u32 %v261, 4294901760
    %v263 = vsub.f32 %v261, %v262
    %v264 = vand.u32 %v263, 4294901760
    %265 = vmatpush.msra.mxu0 %v264
    %v266 = vand.u32 %v77, 4294901760
    %267 = vmatmul.f32.gmra.mxu0 %v266
    %v268 = vpop.f32.mrf.mxu0
    %v269 = vadd.f32 %v168, %v268
    %270 = vdwg.mxu0
    %v271 = vand.u32 %v94, 4294901760
    %v272 = vsub.f32 %v94, %v271
    %273 = vmatpush.msra.mxu0 %v272
    %v274 = vand.u32 %v93, 4294901760
    %v275 = vsub.f32 %v93, %v274
    %276 = vmatpush.msra.mxu0 %v275
    %v277 = vand.u32 %v92, 4294901760
    %v278 = vsub.f32 %v92, %v277
    %279 = vmatpush.msra.mxu0 %v278
    %v280 = vand.u32 %v91, 4294901760
    %v281 = vsub.f32 %v91, %v280
    %282 = vmatpush.msra.mxu0 %v281
    %v283 = vand.u32 %v90, 4294901760
    %v284 = vsub.f32 %v90, %v283
    %285 = vmatpush.msra.mxu0 %v284
    %v286 = vand.u32 %v89, 4294901760
    %v287 = vsub.f32 %v89, %v286
    %288 = vmatpush.msra.mxu0 %v287
    %v289 = vand.u32 %v88, 4294901760
    %v290 = vsub.f32 %v88, %v289
    %291 = vmatpush.msra.mxu0 %v290
    %v292 = vand.u32 %v87, 4294901760
    %v293 = vsub.f32 %v87, %v292
    %294 = vmatpush.msra.mxu0 %v293
    %v295 = vand.u32 %v86, 4294901760
    %v296 = vsub.f32 %v86, %v295
    %297 = vmatpush.msra.mxu0 %v296
    %v298 = vand.u32 %v85, 4294901760
    %v299 = vsub.f32 %v85, %v298
    %300 = vmatpush.msra.mxu0 %v299
    %v301 = vand.u32 %v84, 4294901760
    %v302 = vsub.f32 %v84, %v301
    %303 = vmatpush.msra.mxu0 %v302
    %v304 = vand.u32 %v83, 4294901760
    %v305 = vsub.f32 %v83, %v304
    %306 = vmatpush.msra.mxu0 %v305
    %v307 = vand.u32 %v82, 4294901760
    %v308 = vsub.f32 %v82, %v307
    %309 = vmatpush.msra.mxu0 %v308
    %v310 = vand.u32 %v81, 4294901760
    %v311 = vsub.f32 %v81, %v310
    %312 = vmatpush.msra.mxu0 %v311
    %v313 = vand.u32 %v80, 4294901760
    %v314 = vsub.f32 %v80, %v313
    %315 = vmatpush.msra.mxu0 %v314
    %v316 = vand.u32 %v79, 4294901760
    %v317 = vsub.f32 %v79, %v316
    %318 = vmatpush.msra.mxu0 %v317
    %v319 = vand.u32 %v77, 4294901760
    %v320 = vsub.f32 %v77, %v319
    %321 = vmatmul.f32.gmra.mxu0 %v320
    %v322 = vpop.f32.mrf.mxu0
    %v323 = vadd.f32 %v269, %v322
    %324 = vdwg.mxu0
    %v325 = vand.u32 %v94, 4294901760
    %326 = vmatpush.msra.mxu0 %v325
    %v327 = vand.u32 %v93, 4294901760
    %328 = vmatpush.msra.mxu0 %v327
    %v329 = vand.u32 %v92, 4294901760
    %330 = vmatpush.msra.mxu0 %v329
    %v331 = vand.u32 %v91, 4294901760
    %332 = vmatpush.msra.mxu0 %v331
    %v333 = vand.u32 %v90, 4294901760
    %334 = vmatpush.msra.mxu0 %v333
    %v335 = vand.u32 %v89, 4294901760
    %336 = vmatpush.msra.mxu0 %v335
    %v337 = vand.u32 %v88, 4294901760
    %338 = vmatpush.msra.mxu0 %v337
    %v339 = vand.u32 %v87, 4294901760
    %340 = vmatpush.msra.mxu0 %v339
    %v341 = vand.u32 %v86, 4294901760
    %342 = vmatpush.msra.mxu0 %v341
    %v343 = vand.u32 %v85, 4294901760
    %344 = vmatpush.msra.mxu0 %v343
    %v345 = vand.u32 %v84, 4294901760
    %346 = vmatpush.msra.mxu0 %v345
    %v347 = vand.u32 %v83, 4294901760
    %348 = vmatpush.msra.mxu0 %v347
    %v349 = vand.u32 %v82, 4294901760
    %350 = vmatpush.msra.mxu0 %v349
    %v351 = vand.u32 %v81, 4294901760
    %352 = vmatpush.msra.mxu0 %v351
    %v353 = vand.u32 %v80, 4294901760
    %354 = vmatpush.msra.mxu0 %v353
    %v355 = vand.u32 %v79, 4294901760
    %356 = vmatpush.msra.mxu0 %v355
    %v357 = vand.u32 %v77, 4294901760
    %v358 = vsub.f32 %v77, %v357
    %v359 = vand.u32 %v358, 4294901760
    %360 = vmatmul.f32.gmra.mxu0 %v359
    %v361 = vpop.f32.mrf.mxu0
    %v362 = vadd.f32 %v323, %v361
    %363 = vdwg.mxu0
    %v364 = vand.u32 %v94, 4294901760
    %v365 = vsub.f32 %v94, %v364
    %v366 = vand.u32 %v365, 4294901760
    %367 = vmatpush.msra.mxu0 %v366
    %v368 = vand.u32 %v93, 4294901760
    %v369 = vsub.f32 %v93, %v368
    %v370 = vand.u32 %v369, 4294901760
    %371 = vmatpush.msra.mxu0 %v370
    %v372 = vand.u32 %v92, 4294901760
    %v373 = vsub.f32 %v92, %v372
    %v374 = vand.u32 %v373, 4294901760
    %375 = vmatpush.msra.mxu0 %v374
    %v376 = vand.u32 %v91, 4294901760
    %v377 = vsub.f32 %v91, %v376
    %v378 = vand.u32 %v377, 4294901760
    %379 = vmatpush.msra.mxu0 %v378
    %v380 = vand.u32 %v90, 4294901760
    %v381 = vsub.f32 %v90, %v380
    %v382 = vand.u32 %v381, 4294901760
    %383 = vmatpush.msra.mxu0 %v382
    %v384 = vand.u32 %v89, 4294901760
    %v385 = vsub.f32 %v89, %v384
    %v386 = vand.u32 %v385, 4294901760
    %387 = vmatpush.msra.mxu0 %v386
    %v388 = vand.u32 %v88, 4294901760
    %v389 = vsub.f32 %v88, %v388
    %v390 = vand.u32 %v389, 4294901760
    %391 = vmatpush.msra.mxu0 %v390
    %v392 = vand.u32 %v87, 4294901760
    %v393 = vsub.f32 %v87, %v392
    %v394 = vand.u32 %v393, 4294901760
    %395 = vmatpush.msra.mxu0 %v394
    %v396 = vand.u32 %v86, 4294901760
    %v397 = vsub.f32 %v86, %v396
    %v398 = vand.u32 %v397, 4294901760
    %399 = vmatpush.msra.mxu0 %v398
    %v400 = vand.u32 %v85, 4294901760
    %v401 = vsub.f32 %v85, %v400
    %v402 = vand.u32 %v401, 4294901760
    %403 = vmatpush.msra.mxu0 %v402
    %v404 = vand.u32 %v84, 4294901760
    %v405 = vsub.f32 %v84, %v404
    %v406 = vand.u32 %v405, 4294901760
    %407 = vmatpush.msra.mxu0 %v406
    %v408 = vand.u32 %v83, 4294901760
    %v409 = vsub.f32 %v83, %v408
    %v410 = vand.u32 %v409, 4294901760
    %411 = vmatpush.msra.mxu0 %v410
    %v412 = vand.u32 %v82, 4294901760
    %v413 = vsub.f32 %v82, %v412
    %v414 = vand.u32 %v413, 4294901760
    %415 = vmatpush.msra.mxu0 %v414
    %v416 = vand.u32 %v81, 4294901760
    %v417 = vsub.f32 %v81, %v416
    %v418 = vand.u32 %v417, 4294901760
    %419 = vmatpush.msra.mxu0 %v418
    %v420 = vand.u32 %v80, 4294901760
    %v421 = vsub.f32 %v80, %v420
    %v422 = vand.u32 %v421, 4294901760
    %423 = vmatpush.msra.mxu0 %v422
    %v424 = vand.u32 %v79, 4294901760
    %v425 = vsub.f32 %v79, %v424
    %v426 = vand.u32 %v425, 4294901760
    %427 = vmatpush.msra.mxu0 %v426
    %v428 = vand.u32 %v77, 4294901760
    %429 = vmatmul.f32.gmra.mxu0 %v428
    %v430 = vpop.f32.mrf.mxu0
    %v431 = vadd.f32 %v362, %v430
    %432 = vdwg.mxu0
    %v433 = vand.u32 %v94, 4294901760
    %434 = vmatpush.msra.mxu0 %v433
    %v435 = vand.u32 %v93, 4294901760
    %436 = vmatpush.msra.mxu0 %v435
    %v437 = vand.u32 %v92, 4294901760
    %438 = vmatpush.msra.mxu0 %v437
    %v439 = vand.u32 %v91, 4294901760
    %440 = vmatpush.msra.mxu0 %v439
    %v441 = vand.u32 %v90, 4294901760
    %442 = vmatpush.msra.mxu0 %v441
    %v443 = vand.u32 %v89, 4294901760
    %444 = vmatpush.msra.mxu0 %v443
    %v445 = vand.u32 %v88, 4294901760
    %446 = vmatpush.msra.mxu0 %v445
    %v447 = vand.u32 %v87, 4294901760
    %448 = vmatpush.msra.mxu0 %v447
    %v449 = vand.u32 %v86, 4294901760
    %450 = vmatpush.msra.mxu0 %v449
    %v451 = vand.u32 %v85, 4294901760
    %452 = vmatpush.msra.mxu0 %v451
    %v453 = vand.u32 %v84, 4294901760
    %454 = vmatpush.msra.mxu0 %v453
    %v455 = vand.u32 %v83, 4294901760
    %456 = vmatpush.msra.mxu0 %v455
    %v457 = vand.u32 %v82, 4294901760
    %458 = vmatpush.msra.mxu0 %v457
    %v459 = vand.u32 %v81, 4294901760
    %460 = vmatpush.msra.mxu0 %v459
    %v461 = vand.u32 %v80, 4294901760
    %462 = vmatpush.msra.mxu0 %v461
    %v463 = vand.u32 %v79, 4294901760
    %464 = vmatpush.msra.mxu0 %v463
    %v465 = vand.u32 %v77, 4294901760
    %466 = vmatmul.f32.gmra.mxu0 %v465
    %v467 = vpop.f32.mrf.mxu0
    %v468 = vadd.f32 %v431, %v467
    %469 = vdwg.mxu0
    %v470 = vand.u32 %v110, 4294901760
    %471 = vmatpush.msra.mxu0 %v470
    %v472 = vand.u32 %v109, 4294901760
    %473 = vmatpush.msra.mxu0 %v472
    %v474 = vand.u32 %v108, 4294901760
    %475 = vmatpush.msra.mxu0 %v474
    %v476 = vand.u32 %v107, 4294901760
    %477 = vmatpush.msra.mxu0 %v476
    %v478 = vand.u32 %v106, 4294901760
    %479 = vmatpush.msra.mxu0 %v478
    %v480 = vand.u32 %v105, 4294901760
    %481 = vmatpush.msra.mxu0 %v480
    %v482 = vand.u32 %v104, 4294901760
    %483 = vmatpush.msra.mxu0 %v482
    %v484 = vand.u32 %v103, 4294901760
    %485 = vmatpush.msra.mxu0 %v484
    %v486 = vand.u32 %v102, 4294901760
    %487 = vmatpush.msra.mxu0 %v486
    %v488 = vand.u32 %v101, 4294901760
    %489 = vmatpush.msra.mxu0 %v488
    %v490 = vand.u32 %v100, 4294901760
    %491 = vmatpush.msra.mxu0 %v490
    %v492 = vand.u32 %v99, 4294901760
    %493 = vmatpush.msra.mxu0 %v492
    %v494 = vand.u32 %v98, 4294901760
    %495 = vmatpush.msra.mxu0 %v494
    %v496 = vand.u32 %v97, 4294901760
    %497 = vmatpush.msra.mxu0 %v496
    %v498 = vand.u32 %v96, 4294901760
    %499 = vmatpush.msra.mxu0 %v498
    %v500 = vand.u32 %v95, 4294901760
    %501 = vmatpush.msra.mxu0 %v500
    %v502 = vand.u32 %v78, 4294901760
    %v503 = vsub.f32 %v78, %v502
    %v504 = vand.u32 %v503, 4294901760
    %v505 = vsub.f32 %v503, %v504
    %v506 = vand.u32 %v505, 4294901760
    %507 = vmatmul.f32.gmra.mxu0 %v506
    %v508 = vpop.f32.mrf.mxu0
    %v509 = vadd.f32 %v468, %v508
    %510 = vdwg.mxu0
    %v511 = vand.u32 %v110, 4294901760
    %v512 = vsub.f32 %v110, %v511
    %v513 = vand.u32 %v512, 4294901760
    %v514 = vsub.f32 %v512, %v513
    %v515 = vand.u32 %v514, 4294901760
    %516 = vmatpush.msra.mxu0 %v515
    %v517 = vand.u32 %v109, 4294901760
    %v518 = vsub.f32 %v109, %v517
    %v519 = vand.u32 %v518, 4294901760
    %v520 = vsub.f32 %v518, %v519
    %v521 = vand.u32 %v520, 4294901760
    %522 = vmatpush.msra.mxu0 %v521
    %v523 = vand.u32 %v108, 4294901760
    %v524 = vsub.f32 %v108, %v523
    %v525 = vand.u32 %v524, 4294901760
    %v526 = vsub.f32 %v524, %v525
    %v527 = vand.u32 %v526, 4294901760
    %528 = vmatpush.msra.mxu0 %v527
    %v529 = vand.u32 %v107, 4294901760
    %v530 = vsub.f32 %v107, %v529
    %v531 = vand.u32 %v530, 4294901760
    %v532 = vsub.f32 %v530, %v531
    %v533 = vand.u32 %v532, 4294901760
    %534 = vmatpush.msra.mxu0 %v533
    %v535 = vand.u32 %v106, 4294901760
    %v536 = vsub.f32 %v106, %v535
    %v537 = vand.u32 %v536, 4294901760
    %v538 = vsub.f32 %v536, %v537
    %v539 = vand.u32 %v538, 4294901760
    %540 = vmatpush.msra.mxu0 %v539
    %v541 = vand.u32 %v105, 4294901760
    %v542 = vsub.f32 %v105, %v541
    %v543 = vand.u32 %v542, 4294901760
    %v544 = vsub.f32 %v542, %v543
    %v545 = vand.u32 %v544, 4294901760
    %546 = vmatpush.msra.mxu0 %v545
    %v547 = vand.u32 %v104, 4294901760
    %v548 = vsub.f32 %v104, %v547
    %v549 = vand.u32 %v548, 4294901760
    %v550 = vsub.f32 %v548, %v549
    %v551 = vand.u32 %v550, 4294901760
    %552 = vmatpush.msra.mxu0 %v551
    %v553 = vand.u32 %v103, 4294901760
    %v554 = vsub.f32 %v103, %v553
    %v555 = vand.u32 %v554, 4294901760
    %v556 = vsub.f32 %v554, %v555
    %v557 = vand.u32 %v556, 4294901760
    %558 = vmatpush.msra.mxu0 %v557
    %v559 = vand.u32 %v102, 4294901760
    %v560 = vsub.f32 %v102, %v559
    %v561 = vand.u32 %v560, 4294901760
    %v562 = vsub.f32 %v560, %v561
    %v563 = vand.u32 %v562, 4294901760
    %564 = vmatpush.msra.mxu0 %v563
    %v565 = vand.u32 %v101, 4294901760
    %v566 = vsub.f32 %v101, %v565
    %v567 = vand.u32 %v566, 4294901760
    %v568 = vsub.f32 %v566, %v567
    %v569 = vand.u32 %v568, 4294901760
    %570 = vmatpush.msra.mxu0 %v569
    %v571 = vand.u32 %v100, 4294901760
    %v572 = vsub.f32 %v100, %v571
    %v573 = vand.u32 %v572, 4294901760
    %v574 = vsub.f32 %v572, %v573
    %v575 = vand.u32 %v574, 4294901760
    %576 = vmatpush.msra.mxu0 %v575
    %v577 = vand.u32 %v99, 4294901760
    %v578 = vsub.f32 %v99, %v577
    %v579 = vand.u32 %v578, 4294901760
    %v580 = vsub.f32 %v578, %v579
    %v581 = vand.u32 %v580, 4294901760
    %582 = vmatpush.msra.mxu0 %v581
    %v583 = vand.u32 %v98, 4294901760
    %v584 = vsub.f32 %v98, %v583
    %v585 = vand.u32 %v584, 4294901760
    %v586 = vsub.f32 %v584, %v585
    %v587 = vand.u32 %v586, 4294901760
    %588 = vmatpush.msra.mxu0 %v587
    %v589 = vand.u32 %v97, 4294901760
    %v590 = vsub.f32 %v97, %v589
    %v591 = vand.u32 %v590, 4294901760
    %v592 = vsub.f32 %v590, %v591
    %v593 = vand.u32 %v592, 4294901760
    %594 = vmatpush.msra.mxu0 %v593
    %v595 = vand.u32 %v96, 4294901760
    %v596 = vsub.f32 %v96, %v595
    %v597 = vand.u32 %v596, 4294901760
    %v598 = vsub.f32 %v596, %v597
    %v599 = vand.u32 %v598, 4294901760
    %600 = vmatpush.msra.mxu0 %v599
    %v601 = vand.u32 %v95, 4294901760
    %v602 = vsub.f32 %v95, %v601
    %v603 = vand.u32 %v602, 4294901760
    %v604 = vsub.f32 %v602, %v603
    %v605 = vand.u32 %v604, 4294901760
    %606 = vmatpush.msra.mxu0 %v605
    %v607 = vand.u32 %v78, 4294901760
    %608 = vmatmul.f32.gmra.mxu0 %v607
    %v609 = vpop.f32.mrf.mxu0
    %v610 = vadd.f32 %v509, %v609
    %611 = vdwg.mxu0
    %v612 = vand.u32 %v110, 4294901760
    %v613 = vsub.f32 %v110, %v612
    %614 = vmatpush.msra.mxu0 %v613
    %v615 = vand.u32 %v109, 4294901760
    %v616 = vsub.f32 %v109, %v615
    %617 = vmatpush.msra.mxu0 %v616
    %v618 = vand.u32 %v108, 4294901760
    %v619 = vsub.f32 %v108, %v618
    %620 = vmatpush.msra.mxu0 %v619
    %v621 = vand.u32 %v107, 4294901760
    %v622 = vsub.f32 %v107, %v621
    %623 = vmatpush.msra.mxu0 %v622
    %v624 = vand.u32 %v106, 4294901760
    %v625 = vsub.f32 %v106, %v624
    %626 = vmatpush.msra.mxu0 %v625
    %v627 = vand.u32 %v105, 4294901760
    %v628 = vsub.f32 %v105, %v627
    %629 = vmatpush.msra.mxu0 %v628
    %v630 = vand.u32 %v104, 4294901760
    %v631 = vsub.f32 %v104, %v630
    %632 = vmatpush.msra.mxu0 %v631
    %v633 = vand.u32 %v103, 4294901760
    %v634 = vsub.f32 %v103, %v633
    %635 = vmatpush.msra.mxu0 %v634
    %v636 = vand.u32 %v102, 4294901760
    %v637 = vsub.f32 %v102, %v636
    %638 = vmatpush.msra.mxu0 %v637
    %v639 = vand.u32 %v101, 4294901760
    %v640 = vsub.f32 %v101, %v639
    %641 = vmatpush.msra.mxu0 %v640
    %v642 = vand.u32 %v100, 4294901760
    %v643 = vsub.f32 %v100, %v642
    %644 = vmatpush.msra.mxu0 %v643
    %v645 = vand.u32 %v99, 4294901760
    %v646 = vsub.f32 %v99, %v645
    %647 = vmatpush.msra.mxu0 %v646
    %v648 = vand.u32 %v98, 4294901760
    %v649 = vsub.f32 %v98, %v648
    %650 = vmatpush.msra.mxu0 %v649
    %v651 = vand.u32 %v97, 4294901760
    %v652 = vsub.f32 %v97, %v651
    %653 = vmatpush.msra.mxu0 %v652
    %v654 = vand.u32 %v96, 4294901760
    %v655 = vsub.f32 %v96, %v654
    %656 = vmatpush.msra.mxu0 %v655
    %v657 = vand.u32 %v95, 4294901760
    %v658 = vsub.f32 %v95, %v657
    %659 = vmatpush.msra.mxu0 %v658
    %v660 = vand.u32 %v78, 4294901760
    %v661 = vsub.f32 %v78, %v660
    %662 = vmatmul.f32.gmra.mxu0 %v661
    %v663 = vpop.f32.mrf.mxu0
    %v664 = vadd.f32 %v610, %v663
    %665 = vdwg.mxu0
    %v666 = vand.u32 %v110, 4294901760
    %667 = vmatpush.msra.mxu0 %v666
    %v668 = vand.u32 %v109, 4294901760
    %669 = vmatpush.msra.mxu0 %v668
    %v670 = vand.u32 %v108, 4294901760
    %671 = vmatpush.msra.mxu0 %v670
    %v672 = vand.u32 %v107, 4294901760
    %673 = vmatpush.msra.mxu0 %v672
    %v674 = vand.u32 %v106, 4294901760
    %675 = vmatpush.msra.mxu0 %v674
    %v676 = vand.u32 %v105, 4294901760
    %677 = vmatpush.msra.mxu0 %v676
    %v678 = vand.u32 %v104, 4294901760
    %679 = vmatpush.msra.mxu0 %v678
    %v680 = vand.u32 %v103, 4294901760
    %681 = vmatpush.msra.mxu0 %v680
    %v682 = vand.u32 %v102, 4294901760
    %683 = vmatpush.msra.mxu0 %v682
    %v684 = vand.u32 %v101, 4294901760
    %685 = vmatpush.msra.mxu0 %v684
    %v686 = vand.u32 %v100, 4294901760
    %687 = vmatpush.msra.mxu0 %v686
    %v688 = vand.u32 %v99, 4294901760
    %689 = vmatpush.msra.mxu0 %v688
    %v690 = vand.u32 %v98, 4294901760
    %691 = vmatpush.msra.mxu0 %v690
    %v692 = vand.u32 %v97, 4294901760
    %693 = vmatpush.msra.mxu0 %v692
    %v694 = vand.u32 %v96, 4294901760
    %695 = vmatpush.msra.mxu0 %v694
    %v696 = vand.u32 %v95, 4294901760
    %697 = vmatpush.msra.mxu0 %v696
    %v698 = vand.u32 %v78, 4294901760
    %v699 = vsub.f32 %v78, %v698
    %v700 = vand.u32 %v699, 4294901760
    %701 = vmatmul.f32.gmra.mxu0 %v700
    %v702 = vpop.f32.mrf.mxu0
    %v703 = vadd.f32 %v664, %v702
    %704 = vdwg.mxu0
    %v705 = vand.u32 %v110, 4294901760
    %v706 = vsub.f32 %v110, %v705
    %v707 = vand.u32 %v706, 4294901760
    %708 = vmatpush.msra.mxu0 %v707
    %v709 = vand.u32 %v109, 4294901760
    %v710 = vsub.f32 %v109, %v709
    %v711 = vand.u32 %v710, 4294901760
    %712 = vmatpush.msra.mxu0 %v711
    %v713 = vand.u32 %v108, 4294901760
    %v714 = vsub.f32 %v108, %v713
    %v715 = vand.u32 %v714, 4294901760
    %716 = vmatpush.msra.mxu0 %v715
    %v717 = vand.u32 %v107, 4294901760
    %v718 = vsub.f32 %v107, %v717
    %v719 = vand.u32 %v718, 4294901760
    %720 = vmatpush.msra.mxu0 %v719
    %v721 = vand.u32 %v106, 4294901760
    %v722 = vsub.f32 %v106, %v721
    %v723 = vand.u32 %v722, 4294901760
    %724 = vmatpush.msra.mxu0 %v723
    %v725 = vand.u32 %v105, 4294901760
    %v726 = vsub.f32 %v105, %v725
    %v727 = vand.u32 %v726, 4294901760
    %728 = vmatpush.msra.mxu0 %v727
    %v729 = vand.u32 %v104, 4294901760
    %v730 = vsub.f32 %v104, %v729
    %v731 = vand.u32 %v730, 4294901760
    %732 = vmatpush.msra.mxu0 %v731
    %v733 = vand.u32 %v103, 4294901760
    %v734 = vsub.f32 %v103, %v733
    %v735 = vand.u32 %v734, 4294901760
    %736 = vmatpush.msra.mxu0 %v735
    %v737 = vand.u32 %v102, 4294901760
    %v738 = vsub.f32 %v102, %v737
    %v739 = vand.u32 %v738, 4294901760
    %740 = vmatpush.msra.mxu0 %v739
    %v741 = vand.u32 %v101, 4294901760
    %v742 = vsub.f32 %v101, %v741
    %v743 = vand.u32 %v742, 4294901760
    %744 = vmatpush.msra.mxu0 %v743
    %v745 = vand.u32 %v100, 4294901760
    %v746 = vsub.f32 %v100, %v745
    %v747 = vand.u32 %v746, 4294901760
    %748 = vmatpush.msra.mxu0 %v747
    %v749 = vand.u32 %v99, 4294901760
    %v750 = vsub.f32 %v99, %v749
    %v751 = vand.u32 %v750, 4294901760
    %752 = vmatpush.msra.mxu0 %v751
    %v753 = vand.u32 %v98, 4294901760
    %v754 = vsub.f32 %v98, %v753
    %v755 = vand.u32 %v754, 4294901760
    %756 = vmatpush.msra.mxu0 %v755
    %v757 = vand.u32 %v97, 4294901760
    %v758 = vsub.f32 %v97, %v757
    %v759 = vand.u32 %v758, 4294901760
    %760 = vmatpush.msra.mxu0 %v759
    %v761 = vand.u32 %v96, 4294901760
    %v762 = vsub.f32 %v96, %v761
    %v763 = vand.u32 %v762, 4294901760
    %764 = vmatpush.msra.mxu0 %v763
    %v765 = vand.u32 %v95, 4294901760
    %v766 = vsub.f32 %v95, %v765
    %v767 = vand.u32 %v766, 4294901760
    %768 = vmatpush.msra.mxu0 %v767
    %v769 = vand.u32 %v78, 4294901760
    %770 = vmatmul.f32.gmra.mxu0 %v769
    %v771 = vpop.f32.mrf.mxu0
    %v772 = vadd.f32 %v703, %v771
    %773 = vdwg.mxu0
    %v774 = vand.u32 %v110, 4294901760
    %775 = vmatpush.msra.mxu0 %v774
    %v776 = vand.u32 %v109, 4294901760
    %777 = vmatpush.msra.mxu0 %v776
    %v778 = vand.u32 %v108, 4294901760
    %779 = vmatpush.msra.mxu0 %v778
    %v780 = vand.u32 %v107, 4294901760
    %781 = vmatpush.msra.mxu0 %v780
    %v782 = vand.u32 %v106, 4294901760
    %783 = vmatpush.msra.mxu0 %v782
    %v784 = vand.u32 %v105, 4294901760
    %785 = vmatpush.msra.mxu0 %v784
    %v786 = vand.u32 %v104, 4294901760
    %787 = vmatpush.msra.mxu0 %v786
    %v788 = vand.u32 %v103, 4294901760
    %789 = vmatpush.msra.mxu0 %v788
    %v790 = vand.u32 %v102, 4294901760
    %791 = vmatpush.msra.mxu0 %v790
    %v792 = vand.u32 %v101, 4294901760
    %793 = vmatpush.msra.mxu0 %v792
    %v794 = vand.u32 %v100, 4294901760
    %795 = vmatpush.msra.mxu0 %v794
    %v796 = vand.u32 %v99, 4294901760
    %797 = vmatpush.msra.mxu0 %v796
    %v798 = vand.u32 %v98, 4294901760
    %799 = vmatpush.msra.mxu0 %v798
    %v800 = vand.u32 %v97, 4294901760
    %801 = vmatpush.msra.mxu0 %v800
    %v802 = vand.u32 %v96, 4294901760
    %803 = vmatpush.msra.mxu0 %v802
    %v804 = vand.u32 %v95, 4294901760
    %805 = vmatpush.msra.mxu0 %v804
    %v806 = vand.u32 %v78, 4294901760
    %807 = vmatmul.f32.gmra.mxu0 %v806
    %v808 = vpop.f32.mrf.mxu0
    %v809 = vadd.f32 %v772, %v808
    %810 = vdwg.mxu0
    %v811 = vrot.slane %v809, 4
    %v812 = vadd.f32 %v809, %v811
    %v813 = vrot.slane %v812, 2
    %v814 = vadd.f32 %v812, %v813
    %v815 = vrot.slane %v814, 1
    %v816 = vadd.f32 %v814, %v815
    %v817 = vmul.f32 %v816, 0.125
    %v818 = vmul.f32 %v809, %v809
    %v819 = vrot.slane %v818, 4
    %v820 = vadd.f32 %v818, %v819
    %v821 = vrot.slane %v820, 2
    %v822 = vadd.f32 %v820, %v821
    %v823 = vrot.slane %v822, 1
    %v824 = vadd.f32 %v822, %v823
    %v825 = vmul.f32 %v824, 0.125
    %v826 = vmul.f32 %v817, %v817
    %v827 = vsub.f32 %v825, %v826
    %v828 = vmax.f32 %v827, 0.0
    %v829 = vadd.f32 %v828, 1e-05
    %v830 = vrsqrt.pop %v829
    %v831 = vmul.f32 %v830, %v829
    %v832 = vmul.f32 %v831, %v830
    %v833 = vmul.f32 0.5, %v832
    %v834 = vsub.f32 1.5, %v833
    %v835 = vmul.f32 %v830, %v834
    %vm836 = vweird.f32 %v829
    %vm837 = vweird.f32 %v830
    %vm838 = vmor %vm836, %vm837
    %v839 = vsel %vm838, %v830, %v835
    %v840 = vmul.f32 %v127, %v839
    %v841 = vmul.f32 %v817, %v840
    %v843 = vrot.slane %v841, 7
    %v845 = vsub.f32 %v127, %v843
    %v846 = vperm.slane %v840, 1
    %v847 = vmul.f32 %v809, %v846
    %v848 = vperm.slane %v845, 2
    %v849 = vadd.f32 %v847, %v848
    %v850 = vmax.f32 %v849, 0.0
    %v851 = vperm.slane %v127, 3
    %v852 = vand.u32 %v126, 4294901760
    %853 = vmatpush.msra.mxu0 %v852
    %v854 = vand.u32 %v125, 4294901760
    %855 = vmatpush.msra.mxu0 %v854
    %v856 = vand.u32 %v124, 4294901760
    %857 = vmatpush.msra.mxu0 %v856
    %v858 = vand.u32 %v123, 4294901760
    %859 = vmatpush.msra.mxu0 %v858
    %v860 = vand.u32 %v122, 4294901760
    %861 = vmatpush.msra.mxu0 %v860
    %v862 = vand.u32 %v121, 4294901760
    %863 = vmatpush.msra.mxu0 %v862
    %v864 = vand.u32 %v120, 4294901760
    %865 = vmatpush.msra.mxu0 %v864
    %v866 = vand.u32 %v119, 4294901760
    %867 = vmatpush.msra.mxu0 %v866
    %v868 = vand.u32 %v118, 4294901760
    %869 = vmatpush.msra.mxu0 %v868
    %v870 = vand.u32 %v117, 4294901760
    %871 = vmatpush.msra.mxu0 %v870
    %v872 = vand.u32 %v116, 4294901760
    %873 = vmatpush.msra.mxu0 %v872
    %v874 = vand.u32 %v115, 4294901760
    %875 = vmatpush.msra.mxu0 %v874
    %v876 = vand.u32 %v114, 4294901760
    %877 = vmatpush.msra.mxu0 %v876
    %v878 = vand.u32 %v113, 4294901760
    %879 = vmatpush.msra.mxu0 %v878
    %v880 = vand.u32 %v112, 4294901760
    %881 = vmatpush.msra.mxu0 %v880
    %v882 = vand.u32 %v111, 4294901760
    %883 = vmatpush.msra.mxu0 %v882
    %v884 = vand.u32 %v850, 4294901760
    %v885 = vsub.f32 %v850, %v884
    %v886 = vand.u32 %v885, 4294901760
    %v887 = vsub.f32 %v885, %v886
    %v888 = vand.u32 %v887, 4294901760
    %889 = vmatmul.f32.gmra.mxu0 %v888
    %v890 = vpop.f32.mrf.mxu0
    %v891 = vadd.f32 %v851, %v890
    %892 = vdwg.mxu0
    %v893 = vand.u32 %v126, 4294901760
    %v894 = vsub.f32 %v126, %v893
    %v895 = vand.u32 %v894, 4294901760
    %v896 = vsub.f32 %v894, %v895
    %v897 = vand.u32 %v896, 4294901760
    %898 = vmatpush.msra.mxu0 %v897
    %v899 = vand.u32 %v125, 4294901760
    %v900 = vsub.f32 %v125, %v899
    %v901 = vand.u32 %v900, 4294901760
    %v902 = vsub.f32 %v900, %v901
    %v903 = vand.u32 %v902, 4294901760
    %904 = vmatpush.msra.mxu0 %v903
    %v905 = vand.u32 %v124, 4294901760
    %v906 = vsub.f32 %v124, %v905
    %v907 = vand.u32 %v906, 4294901760
    %v908 = vsub.f32 %v906, %v907
    %v909 = vand.u32 %v908, 4294901760
    %910 = vmatpush.msra.mxu0 %v909
    %v911 = vand.u32 %v123, 4294901760
    %v912 = vsub.f32 %v123, %v911
    %v913 = vand.u32 %v912, 4294901760
    %v914 = vsub.f32 %v912, %v913
    %v915 = vand.u32 %v914, 4294901760
    %916 = vmatpush.msra.mxu0 %v915
    %v917 = vand.u32 %v122, 4294901760
    %v918 = vsub.f32 %v122, %v917
    %v919 = vand.u32 %v918, 4294901760
    %v920 = vsub.f32 %v918, %v919
    %v921 = vand.u32 %v920, 4294901760
    %922 = vmatpush.msra.mxu0 %v921
    %v923 = vand.u32 %v121, 4294901760
    %v924 = vsub.f32 %v121, %v923
    %v925 = vand.u32 %v924, 4294901760
    %v926 = vsub.f32 %v924, %v925
    %v927 = vand.u32 %v926, 4294901760
    %928 = vmatpush.msra.mxu0 %v927
    %v929 = vand.u32 %v120, 4294901760
    %v930 = vsub.f32 %v120, %v929
    %v931 = vand.u32 %v930, 4294901760
    %v932 = vsub.f32 %v930, %v931
    %v933 = vand.u32 %v932, 4294901760
    %934 = vmatpush.msra.mxu0 %v933
    %v935 = vand.u32 %v119, 4294901760
    %v936 = vsub.f32 %v119, %v935
    %v937 = vand.u32 %v936, 4294901760
    %v938 = vsub.f32 %v936, %v937
    %v939 = vand.u32 %v938, 4294901760
    %940 = vmatpush.msra.mxu0 %v939
    %v941 = vand.u32 %v118, 4294901760
    %v942 = vsub.f32 %v118, %v941
    %v943 = vand.u32 %v942, 4294901760
    %v944 = vsub.f32 %v942, %v943
    %v945 = vand.u32 %v944, 4294901760
    %946 = vmatpush.msra.mxu0 %v945
    %v947 = vand.u32 %v117, 4294901760
    %v948 = vsub.f32 %v117, %v947
    %v949 = vand.u32 %v948, 4294901760
    %v950 = vsub.f32 %v948, %v949
    %v951 = vand.u32 %v950, 4294901760
    %952 = vmatpush.msra.mxu0 %v951
    %v953 = vand.u32 %v116, 4294901760
    %v954 = vsub.f32 %v116, %v953
    %v955 = vand.u32 %v954, 4294901760
    %v956 = vsub.f32 %v954, %v955
    %v957 = vand.u32 %v956, 4294901760
    %958 = vmatpush.msra.mxu0 %v957
    %v959 = vand.u32 %v115, 4294901760
    %v960 = vsub.f32 %v115, %v959
    %v961 = vand.u32 %v960, 4294901760
    %v962 = vsub.f32 %v960, %v961
    %v963 = vand.u32 %v962, 4294901760
    %964 = vmatpush.msra.mxu0 %v963
    %v965 = vand.u32 %v114, 4294901760
    %v966 = vsub.f32 %v114, %v965
    %v967 = vand.u32 %v966, 4294901760
    %v968 = vsub.f32 %v966, %v967
    %v969 = vand.u32 %v968, 4294901760
    %970 = vmatpush.msra.mxu0 %v969
    %v971 = vand.u32 %v113, 4294901760
    %v972 = vsub.f32 %v113, %v971
    %v973 = vand.u32 %v972, 4294901760
    %v974 = vsub.f32 %v972, %v973
    %v975 = vand.u32 %v974, 4294901760
    %976 = vmatpush.msra.mxu0 %v975
    %v977 = vand.u32 %v112, 4294901760
    %v978 = vsub.f32 %v112, %v977
    %v979 = vand.u32 %v978, 4294901760
    %v980 = vsub.f32 %v978, %v979
    %v981 = vand.u32 %v980, 4294901760
    %982 = vmatpush.msra.mxu0 %v981
    %v983 = vand.u32 %v111, 4294901760
    %v984 = vsub.f32 %v111, %v983
    %v985 = vand.u32 %v984, 4294901760
    %v986 = vsub.f32 %v984, %v985
    %v987 = vand.u32 %v986, 4294901760
    %988 = vmatpush.msra.mxu0 %v987
    %v989 = vand.u32 %v850, 4294901760
    %990 = vmatmul.f32.gmra.mxu0 %v989
    %v991 = vpop.f32.mrf.mxu0
    %v992 = vadd.f32 %v891, %v991
    %993 = vdwg.mxu0
    %v994 = vand.u32 %v126, 4294901760
    %v995 = vsub.f32 %v126, %v994
    %996 = vmatpush.msra.mxu0 %v995
    %v997 = vand.u32 %v125, 4294901760
    %v998 = vsub.f32 %v125, %v997
    %999 = vmatpush.msra.mxu0 %v998
    %v1000 = vand.u32 %v124, 4294901760
    %v1001 = vsub.f32 %v124, %v1000
    %1002 = vmatpush.msra.mxu0 %v1001
    %v1003 = vand.u32 %v123, 4294901760
    %v1004 = vsub.f32 %v123, %v1003
    %1005 = vmatpush.msra.mxu0 %v1004
    %v1006 = vand.u32 %v122, 4294901760
    %v1007 = vsub.f32 %v122, %v1006
    %1008 = vmatpush.msra.mxu0 %v1007
    %v1009 = vand.u32 %v121, 4294901760
    %v1010 = vsub.f32 %v121, %v1009
    %1011 = vmatpush.msra.mxu0 %v1010
    %v1012 = vand.u32 %v120, 4294901760
    %v1013 = vsub.f32 %v120, %v1012
    %1014 = vmatpush.msra.mxu0 %v1013
    %v1015 = vand.u32 %v119, 4294901760
    %v1016 = vsub.f32 %v119, %v1015
    %1017 = vmatpush.msra.mxu0 %v1016
    %v1018 = vand.u32 %v118, 4294901760
    %v1019 = vsub.f32 %v118, %v1018
    %1020 = vmatpush.msra.mxu0 %v1019
    %v1021 = vand.u32 %v117, 4294901760
    %v1022 = vsub.f32 %v117, %v1021
    %1023 = vmatpush.msra.mxu0 %v1022
    %v1024 = vand.u32 %v116, 4294901760
    %v1025 = vsub.f32 %v116, %v1024
    %1026 = vmatpush.msra.mxu0 %v1025
    %v1027 = vand.u32 %v115, 4294901760
    %v1028 = vsub.f32 %v115, %v1027
    %1029 = vmatpush.msra.mxu0 %v1028
    %v1030 = vand.u32 %v114, 4294901760
    %v1031 = vsub.f32 %v114, %v1030
    %1032 = vmatpush.msra.mxu0 %v1031
    %v1033 = vand.u32 %v113, 4294901760
    %v1034 = vsub.f32 %v113, %v1033
    %1035 = vmatpush.msra.mxu0 %v1034
    %v1036 = vand.u32 %v112, 4294901760
    %v1037 = vsub.f32 %v112, %v1036
    %1038 = vmatpush.msra.mxu0 %v1037
    %v1039 = vand.u32 %v111, 4294901760
    %v1040 = vsub.f32 %v111, %v1039
    %1041 = vmatpush.msra.mxu0 %v1040
    %v1042 = vand.u32 %v850, 4294901760
    %v1043 = vsub.f32 %v850, %v1042
    %1044 = vmatmul.f32.gmra.mxu0 %v1043
    %v1045 = vpop.f32.mrf.mxu0
    %v1046 = vadd.f32 %v992, %v1045
    %1047 = vdwg.mxu0
    %v1048 = vand.u32 %v126, 4294901760
    %1049 = vmatpush.msra.mxu0 %v1048
    %v1050 = vand.u32 %v125, 4294901760
    %1051 = vmatpush.msra.mxu0 %v1050
    %v1052 = vand.u32 %v124, 4294901760
    %1053 = vmatpush.msra.mxu0 %v1052
    %v1054 = vand.u32 %v123, 4294901760
    %1055 = vmatpush.msra.mxu0 %v1054
    %v1056 = vand.u32 %v122, 4294901760
    %1057 = vmatpush.msra.mxu0 %v1056
    %v1058 = vand.u32 %v121, 4294901760
    %1059 = vmatpush.msra.mxu0 %v1058
    %v1060 = vand.u32 %v120, 4294901760
    %1061 = vmatpush.msra.mxu0 %v1060
    %v1062 = vand.u32 %v119, 4294901760
    %1063 = vmatpush.msra.mxu0 %v1062
    %v1064 = vand.u32 %v118, 4294901760
    %1065 = vmatpush.msra.mxu0 %v1064
    %v1066 = vand.u32 %v117, 4294901760
    %1067 = vmatpush.msra.mxu0 %v1066
    %v1068 = vand.u32 %v116, 4294901760
    %1069 = vmatpush.msra.mxu0 %v1068
    %v1070 = vand.u32 %v115, 4294901760
    %1071 = vmatpush.msra.mxu0 %v1070
    %v1072 = vand.u32 %v114, 4294901760
    %1073 = vmatpush.msra.mxu0 %v1072
    %v1074 = vand.u32 %v113, 4294901760
    %1075 = vmatpush.msra.mxu0 %v1074
    %v1076 = vand.u32 %v112, 4294901760
    %1077 = vmatpush.msra.mxu0 %v1076
    %v1078 = vand.u32 %v111, 4294901760
    %1079 = vmatpush.msra.mxu0 %v1078
    %v1080 = vand.u32 %v850, 4294901760
    %v1081 = vsub.f32 %v850, %v1080
    %v1082 = vand.u32 %v1081, 4294901760
    %1083 = vmatmul.f32.gmra.mxu0 %v1082
    %v1084 = vpop.f32.mrf.mxu0
    %v1085 = vadd.f32 %v1046, %v1084
    %1086 = vdwg.mxu0
    %v1087 = vand.u32 %v126, 4294901760
    %v1088 = vsub.f32 %v126, %v1087
    %v1089 = vand.u32 %v1088, 4294901760
    %1090 = vmatpush.msra.mxu0 %v1089
    %v1091 = vand.u32 %v125, 4294901760
    %v1092 = vsub.f32 %v125, %v1091
    %v1093 = vand.u32 %v1092, 4294901760
    %1094 = vmatpush.msra.mxu0 %v1093
    %v1095 = vand.u32 %v124, 4294901760
    %v1096 = vsub.f32 %v124, %v1095
    %v1097 = vand.u32 %v1096, 4294901760
    %1098 = vmatpush.msra.mxu0 %v1097
    %v1099 = vand.u32 %v123, 4294901760
    %v1100 = vsub.f32 %v123, %v1099
    %v1101 = vand.u32 %v1100, 4294901760
    %1102 = vmatpush.msra.mxu0 %v1101
    %v1103 = vand.u32 %v122, 4294901760
    %v1104 = vsub.f32 %v122, %v1103
    %v1105 = vand.u32 %v1104, 4294901760
    %1106 = vmatpush.msra.mxu0 %v1105
    %v1107 = vand.u32 %v121, 4294901760
    %v1108 = vsub.f32 %v121, %v1107
    %v1109 = vand.u32 %v1108, 4294901760
    %1110 = vmatpush.msra.mxu0 %v1109
    %v1111 = vand.u32 %v120, 4294901760
    %v1112 = vsub.f32 %v120, %v1111
    %v1113 = vand.u32 %v1112, 4294901760
    %1114 = vmatpush.msra.mxu0 %v1113
    %v1115 = vand.u32 %v119, 4294901760
    %v1116 = vsub.f32 %v119, %v1115
    %v1117 = vand.u32 %v1116, 4294901760
    %1118 = vmatpush.msra.mxu0 %v1117
    %v1119 = vand.u32 %v118, 4294901760
    %v1120 = vsub.f32 %v118, %v1119
    %v1121 = vand.u32 %v1120, 4294901760
    %1122 = vmatpush.msra.mxu0 %v1121
    %v1123 = vand.u32 %v117, 4294901760
    %v1124 = vsub.f32 %v117, %v1123
    %v1125 = vand.u32 %v1124, 4294901760
    %1126 = vmatpush.msra.mxu0 %v1125
    %v1127 = vand.u32 %v116, 4294901760
    %v1128 = vsub.f32 %v116, %v1127
    %v1129 = vand.u32 %v1128, 4294901760
    %1130 = vmatpush.msra.mxu0 %v1129
    %v1131 = vand.u32 %v115, 4294901760
    %v1132 = vsub.f32 %v115, %v1131
    %v1133 = vand.u32 %v1132, 4294901760
    %1134 = vmatpush.msra.mxu0 %v1133
    %v1135 = vand.u32 %v114, 4294901760
    %v1136 = vsub.f32 %v114, %v1135
    %v1137 = vand.u32 %v1136, 4294901760
    %1138 = vmatpush.msra.mxu0 %v1137
    %v1139 = vand.u32 %v113, 4294901760
    %v1140 = vsub.f32 %v113, %v1139
    %v1141 = vand.u32 %v1140, 4294901760
    %1142 = vmatpush.msra.mxu0 %v1141
    %v1143 = vand.u32 %v112, 4294901760
    %v1144 = vsub.f32 %v112, %v1143
    %v1145 = vand.u32 %v1144, 4294901760
    %1146 = vmatpush.msra.mxu0 %v1145
    %v1147 = vand.u32 %v111, 4294901760
    %v1148 = vsub.f32 %v111, %v1147
    %v1149 = vand.u32 %v1148, 4294901760
    %1150 = vmatpush.msra.mxu0 %v1149
    %v1151 = vand.u32 %v850, 4294901760
    %1152 = vmatmul.f32.gmra.mxu0 %v1151
    %v1153 = vpop.f32.mrf.mxu0
    %v1154 = vadd.f32 %v1085, %v1153
    %1155 = vdwg.mxu0
    %v1156 = vand.u32 %v126, 4294901760
    %1157 = vmatpush.msra.mxu0 %v1156
    %v1158 = vand.u32 %v125, 4294901760
    %1159 = vmatpush.msra.mxu0 %v1158
    %v1160 = vand.u32 %v124, 4294901760
    %1161 = vmatpush.msra.mxu0 %v1160
    %v1162 = vand.u32 %v123, 4294901760
    %1163 = vmatpush.msra.mxu0 %v1162
    %v1164 = vand.u32 %v122, 4294901760
    %1165 = vmatpush.msra.mxu0 %v1164
    %v1166 = vand.u32 %v121, 4294901760
    %1167 = vmatpush.msra.mxu0 %v1166
    %v1168 = vand.u32 %v120, 4294901760
    %1169 = vmatpush.msra.mxu0 %v1168
    %v1170 = vand.u32 %v119, 4294901760
    %1171 = vmatpush.msra.mxu0 %v1170
    %v1172 = vand.u32 %v118, 4294901760
    %1173 = vmatpush.msra.mxu0 %v1172
    %v1174 = vand.u32 %v117, 4294901760
    %1175 = vmatpush.msra.mxu0 %v1174
    %v1176 = vand.u32 %v116, 4294901760
    %1177 = vmatpush.msra.mxu0 %v1176
    %v1178 = vand.u32 %v115, 4294901760
    %1179 = vmatpush.msra.mxu0 %v1178
    %v1180 = vand.u32 %v114, 4294901760
    %1181 = vmatpush.msra.mxu0 %v1180
    %v1182 = vand.u32 %v113, 4294901760
    %1183 = vmatpush.msra.mxu0 %v1182
    %v1184 = vand.u32 %v112, 4294901760
    %1185 = vmatpush.msra.mxu0 %v1184
    %v1186 = vand.u32 %v111, 4294901760
    %1187 = vmatpush.msra.mxu0 %v1186
    %v1188 = vand.u32 %v850, 4294901760
    %1189 = vmatmul.f32.gmra.mxu0 %v1188
    %v1190 = vpop.f32.mrf.mxu0
    %v1191 = vadd.f32 %v1154, %v1190
    %1192 = vdwg.mxu0
    %v1193 = vmul.f32 %v1191, %v1191
    %1194 = vadd.xlane.f32.xlu0 %v1193
    %v1195 = vpop.xlane.xlu0 %1194
    %v1196 = vmax.f32 %v1195, 1e-24
    %v1197 = vrsqrt.pop %v1196
    %v1198 = vmul.f32 %v1197, %v1196
    %v1199 = vmul.f32 %v1198, %v1197
    %v1200 = vmul.f32 0.5, %v1199
    %v1201 = vsub.f32 1.5, %v1200
    %v1202 = vmul.f32 %v1197, %v1201
    %vm1203 = vweird.f32 %v1196
    %vm1204 = vweird.f32 %v1197
    %vm1205 = vmor %vm1203, %vm1204
    %v1206 = vsel %vm1205, %v1197, %v1202
    %v1207 = vmul.f32 %v1191, %v1206
    %1208 = vst [vmem:[#allocation10] sm:$0xff] %v1207
    // Predicated region
    $region34: #{tpu_custom_call.1} parent=1 // pred_check
      _
    $region35: #{tpu_custom_call.1} parent=1 // pred_check_branch
      %1210 = sbr.rel (0) target = $region37
    $region36: #{tpu_custom_call.1} parent=1 // pred_region
      %1212 = vsyncadd [#allocation4], 0
      %s1214 = sshll.u32 [#allocation10], 4
      %s1215 = int_to_ptr.vmem [resolvable:$true] %s1214
      %s1216 = sshll.u32 %s4, 4
      %s1217 = int_to_ptr.hbm [resolvable:$true] %s1216
      %1219 = dma.vmem_to_hbm [thread:$0]  %s1215, 128, %s1217, [#allocation4]
    $region37: #{tpu_custom_call.1} parent=1 // pred_fallthru
      _
    // Predicated region
    $region38: #{tpu_custom_call.1} parent=1 // pred_check
      _
    $region39: #{tpu_custom_call.1} parent=1 // pred_check_branch
      %1221 = sbr.rel (0) target = $region41
    $region40: #{tpu_custom_call.1} parent=1 // pred_region
      %1223 = dma.done [#allocation4], 128
    $region41: #{tpu_custom_call.1} parent=1 // pred_fallthru
      _
    %1224 = vsyncpa [#allocation3], 1
    %1225 = vsyncpa [#allocation6], 1
    %1226 = vsyncpa [#allocation9], 1
    %1227 = vsyncpa [#allocation4], 1

</llo_original>
